<compile_context>
chip_gen: v7x
topology: tpu7x:2x2x1
jax: 0.10.0
libtpu: 0.0.40
codegen_flags: <defaults>
</compile_context>

<pallas_src>
import functools

import jax
import jax.numpy as jnp
from jax.experimental import pallas as pl
from jax.experimental.pallas import tpu as pltpu


def _round_up(a, b):
    return ((a + b - 1) // b) * b


def _clipnorm_full_kernel(x_ref, o_ref, *, max_norm):
    # Norm over the whole (lane-dense) last dim of a (TR, F) tile.
    x = x_ref[...]
    xf = x.astype(jnp.float32)
    sq_sum = jnp.sum(xf * xf, axis=-1, keepdims=True)
    # rsqrt(0) = inf -> min(inf, 1) = 1, matching torch's max_norm/0 semantics.
    scale = jnp.minimum(max_norm * jax.lax.rsqrt(sq_sum), 1.0)
    o_ref[...] = (x * scale.astype(x.dtype)).astype(o_ref.dtype)


def _clipnorm_grouped_kernel(x_ref, g_ref, o_ref, *, max_norm):
    # Per-subspace norms without giving up lane density: G is an (F, F)
    # block-diagonal 0/1 matrix, so sq @ G sums the squares inside each
    # size-dps subspace AND broadcasts the sum back onto every lane of that
    # subspace, using the otherwise-idle MXU. fp32 contract precision keeps
    # the reduction exact.
    x = x_ref[...]
    xf = x.astype(jnp.float32)
    sq = xf * xf
    sq_sum = jnp.dot(
        sq,
        g_ref[...],
        preferred_element_type=jnp.float32,
        precision=jax.lax.Precision.HIGHEST,
    )
    scale = jnp.minimum(max_norm * jax.lax.rsqrt(sq_sum), 1.0)
    o_ref[...] = (x * scale.astype(x.dtype)).astype(o_ref.dtype)


def _choose_row_tile(rows, feat, itemsize):
    # Target ~2 MiB per input block (mem-bound: big DMAs amortize per-step
    # overhead; double-buffered in+out stays ~8 MiB, fine on all generations),
    # multiple of 16 sublanes (safe for f32 and bf16 packing).
    target_bytes = 2 * 1024 * 1024
    tr = max(16, (target_bytes // max(feat * itemsize, 1)) // 16 * 16)
    # Keep at least 2 grid steps when there is enough work (v7x: 2 TCs).
    if rows >= 32:
        tr = min(tr, _round_up(pl.cdiv(rows, 2), 16))
    # Never exceed the (16-padded) row count.
    tr = min(tr, _round_up(rows, 16))
    return tr


def clip_norm(x, max_norm=0.8, dimensions_per_space=None):
    """Pallas implementation of ClipNorm.forward (feature-last layout)."""
    orig_shape = x.shape
    feat = orig_shape[-1]
    dps = dimensions_per_space
    if dps:
        assert feat % dps == 0, "last dim must be divisible by dimensions_per_space"

    rows = 1
    for s in orig_shape[:-1]:
        rows *= s
    flat = x.reshape(rows, feat)

    itemsize = jnp.dtype(x.dtype).itemsize
    tr = _choose_row_tile(rows, feat, itemsize)
    padded_rows = _round_up(rows, tr)
    if padded_rows != rows:
        # Zero padding is harmless: zero rows get scale 1 and are sliced off.
        flat = jnp.pad(flat, ((0, padded_rows - rows), (0, 0)))
    grid = (padded_rows // tr,)

    compiler_params = pltpu.CompilerParams(
        dimension_semantics=("parallel",),
        vmem_limit_bytes=32 * 1024 * 1024,
    )
    out_shape = jax.ShapeDtypeStruct((padded_rows, feat), x.dtype)

    if dps and dps != feat:
        # Block-diagonal grouping matrix: G[a, b] = 1 iff features a and b
        # belong to the same size-dps subspace.
        gid = jnp.arange(feat, dtype=jnp.int32) // dps
        g = (gid[:, None] == gid[None, :]).astype(jnp.float32)
        out_flat = pl.pallas_call(
            functools.partial(_clipnorm_grouped_kernel, max_norm=max_norm),
            out_shape=out_shape,
            grid_spec=pltpu.PrefetchScalarGridSpec(
                num_scalar_prefetch=0,
                grid=grid,
                in_specs=[
                    pl.BlockSpec((tr, feat), lambda i: (i, 0)),
                    pl.BlockSpec((feat, feat), lambda i: (0, 0)),
                ],
                out_specs=pl.BlockSpec((tr, feat), lambda i: (i, 0)),
            ),
            compiler_params=compiler_params,
        )(flat, g)
    else:
        out_flat = pl.pallas_call(
            functools.partial(_clipnorm_full_kernel, max_norm=max_norm),
            out_shape=out_shape,
            grid_spec=pltpu.PrefetchScalarGridSpec(
                num_scalar_prefetch=0,
                grid=grid,
                in_specs=[pl.BlockSpec((tr, feat), lambda i: (i, 0))],
                out_specs=pl.BlockSpec((tr, feat), lambda i: (i, 0)),
            ),
            compiler_params=compiler_params,
        )(flat)

    if padded_rows != rows:
        out_flat = out_flat[:rows]
    return out_flat.reshape(orig_shape)


def _clip_norm_ref(x, max_norm=0.8, dimensions_per_space=None):
    orig_shape = x.shape
    if dimensions_per_space:
        d = dimensions_per_space
        rs = x.reshape(orig_shape[:-1] + (orig_shape[-1] // d, d))
    else:
        rs = x
    l2 = jnp.sqrt(jnp.sum(jnp.square(rs.astype(jnp.float32)), axis=-1, keepdims=True))
    out = jnp.minimum(max_norm / l2, 1.0) * rs.astype(jnp.float32)
    return out.reshape(orig_shape).astype(x.dtype)


if __name__ == "__main__":
    key = jax.random.PRNGKey(0)
    # Small, feature-last input: (batch=2, seq=8, hidden=32).
    x = jax.random.normal(key, (2, 8, 32), dtype=jnp.float32) * 0.5

    # Case 1: norm over the full last dim.
    out1 = jax.block_until_ready(clip_norm(x, max_norm=0.8, dimensions_per_space=None))
    ref1 = _clip_norm_ref(x, 0.8, None)

    # Case 2: norm over size-8 subspaces of the last dim (lane-dense grouped path).
    out2 = jax.block_until_ready(clip_norm(x, max_norm=0.8, dimensions_per_space=8))
    ref2 = _clip_norm_ref(x, 0.8, 8)

    # Case 3: row count not a multiple of the tile (exercises the padding path).
    x3 = jax.random.normal(jax.random.PRNGKey(1), (3, 7, 32), dtype=jnp.float32)
    out3 = jax.block_until_ready(clip_norm(x3, max_norm=0.8, dimensions_per_space=8))
    ref3 = _clip_norm_ref(x3, 0.8, 8)

    assert out1.shape == x.shape and out1.dtype == x.dtype
    assert out2.shape == x.shape and out2.dtype == x.dtype
    assert out3.shape == x3.shape and out3.dtype == x3.dtype
    assert jnp.allclose(out1, ref1, atol=1e-5, rtol=1e-5)
    assert jnp.allclose(out2, ref2, atol=1e-5, rtol=1e-5)
    assert jnp.allclose(out3, ref3, atol=1e-5, rtol=1e-5)

    print("KERNEL_OK")
</pallas_src>

<mosaic_0001>
module attributes {stable_mosaic.version = 11 : i64} {
  func.func @_clipnorm_full_kernel(%arg0: i32, %arg1: memref<16x32xf32, #tpu.memory_space<vmem>>, %arg2: memref<16x32xf32, #tpu.memory_space<vmem>>) attributes {dimension_semantics = [#tpu.dimension_semantics<parallel>], iteration_bounds = array<i64: 1>, scalar_prefetch = 0 : i64, scratch_operands = 0 : i64, tpu.core_type = #tpu.core_type<tc>, window_params = [{transform_indices = @transform_0, window_bounds = array<i64: 16, 32>}, {transform_indices = @transform_1, window_bounds = array<i64: 16, 32>}]} {
    %c0 = arith.constant 0 : index
    %c0_0 = arith.constant 0 : index
    %0 = vector.load %arg1[%c0, %c0_0] : memref<16x32xf32, #tpu.memory_space<vmem>>, vector<16x32xf32>
    %1 = arith.mulf %0, %0 : vector<16x32xf32>
    %cst = arith.constant dense<0.000000e+00> : vector<16xf32>
    %2 = vector.multi_reduction <add>, %1, %cst [1] : vector<16x32xf32> to vector<16xf32>
    %3 = vector.shape_cast %2 : vector<16xf32> to vector<16x1xf32>
    %4 = math.rsqrt %3 : vector<16x1xf32>
    %cst_1 = arith.constant 8.000000e-01 : f32
    %5 = vector.broadcast %cst_1 : f32 to vector<16x1xf32>
    %6 = arith.mulf %5, %4 : vector<16x1xf32>
    %cst_2 = arith.constant 1.000000e+00 : f32
    %7 = vector.broadcast %cst_2 : f32 to vector<16x1xf32>
    %8 = arith.minimumf %6, %7 : vector<16x1xf32>
    %9 = vector.broadcast %8 : vector<16x1xf32> to vector<16x32xf32>
    %10 = arith.mulf %0, %9 : vector<16x32xf32>
    %c0_3 = arith.constant 0 : index
    %c0_4 = arith.constant 0 : index
    %11 = vector.load %arg2[%c0_3, %c0_4] : memref<16x32xf32, #tpu.memory_space<vmem>>, vector<16x32xf32>
    tpu.vector_store %arg2[%c0_3, %c0_4], %10 {strides = array<i32>} : memref<16x32xf32, #tpu.memory_space<vmem>>, vector<16x32xf32>,
    return
  }
  func.func @transform_0(%arg0: i32) -> (i32, i32) {
    %c0_i32 = arith.constant 0 : i32
    %c0_i32_0 = arith.constant 0 : i32
    return %arg0, %c0_i32 : i32, i32
  }
  func.func @transform_1(%arg0: i32) -> (i32, i32) {
    %c0_i32 = arith.constant 0 : i32
    %c0_i32_0 = arith.constant 0 : i32
    return %arg0, %c0_i32 : i32, i32
  }
}

</mosaic_0001>

<llo_original>
// kernel: tpu_custom_call.1
$region0: #{tpu_custom_call.1}
  #allocation0 [shape = 'u32[]', space=smem, size = 0x4, offset = 0x4, fixed_abs, tag = 'smem constant byte address 0x4 - core index']
  #allocation1 [shape = 'u32[144,128]{1,0:T(1,128)}', space=vmem, size = 0x12000, scoped, tag = 'internal scratch']
  %s0 = inlined_call_operand.hbm [shape: f32[16,32], index: 0, kind: input, shape index: {}]
  %s1 = inlined_call_operand.hbm [shape: f32[16,32], index: 1, kind: output, shape index: {}]
  %s2 = sld [smem:[#allocation0]]
  $region18: #{tpu_custom_call.1} parent=0
    _
  %s4 = ssub.s32 1, %s2
  %s5 = scalar_select 0, %s4, %s2
  $region1: #{tpu_custom_call.1} parent=0
    #allocation2 [shape = 'u8[8192]{0}', space=vmem, size = 0x2000, scoped, tag = 'input window, operand 0, single buffered']
    #allocation3 [shape = 's32[1]{0}', space=sflag, size = 0x4, scoped, tag = 'scoped memory for tpu_custom_call.1']
    #allocation4 [shape = 's32[1]{0}', space=sflag, size = 0x4, scoped, tag = 'scoped memory for tpu_custom_call.1']
    #allocation5 [shape = 'u8[8192]{0}', space=vmem, size = 0x2000, scoped, tag = 'output window, operand 0, single buffered']
    %6 = vsyncpa [#allocation3], 0
    %7 = vsyncpa [#allocation4], 0
    // Predicated region
    $region2: #{tpu_custom_call.1} parent=1 // pred_check
      _
    $region3: #{tpu_custom_call.1} parent=1 // pred_check_branch
      %9 = sbr.rel (0) target = $region5
    $region4: #{tpu_custom_call.1} parent=1 // pred_region
      %s11 = ssub.s32 256, 256
      %12 = vsyncadd [#allocation3], %s11
      %s13 = sshll.u32 [#allocation2], 4
      %s14 = int_to_ptr.vmem [resolvable:$true] %s13
      %19 = dma.hbm_to_vmem [thread:$0]  %s0, 256, %s14, [#allocation3], 128, 128, 8
    $region5: #{tpu_custom_call.1} parent=1 // pred_fallthru
      _
    // Predicated region
    $region6: #{tpu_custom_call.1} parent=1 // pred_check
      _
    $region7: #{tpu_custom_call.1} parent=1 // pred_check_branch
      %21 = sbr.rel (0) target = $region9
    $region8: #{tpu_custom_call.1} parent=1 // pred_region
      %22 = dma.done [#allocation3], 256
    $region9: #{tpu_custom_call.1} parent=1 // pred_fallthru
      _
    %v23 = vld [vmem:[#allocation2] sm:$0xff]
    %v24 = vld [vmem:[#allocation2 + $0x8] sm:$0xff]
    %v25 = vmul.f32 %v23, %v23
    %v26 = vmul.f32 %v24, %v24
    %vm27 = vcmask 261120
    %v28 = vsel %vm27, %v25, 0.0
    %29 = vadd.xlane.f32.xlu0 %v28
    %v30 = vpop.xlane.xlu0 %29
    %v31 = vsel %vm27, %v26, 0.0
    %32 = vadd.xlane.f32.xlu0 %v31
    %v33 = vpop.xlane.xlu0 %32
    %v34 = vrsqrt.pop %v30
    %v35 = vrsqrt.pop %v33
    %v36 = vmul.f32 %v34, 0.8
    %v37 = vmul.f32 %v35, 0.8
    %v38 = vmin.f32 %v36, 1.0
    %v39 = vmin.f32 %v37, 1.0
    %v40 = vmul.f32 %v23, %v38
    %v41 = vmul.f32 %v24, %v39
    %42 = vst.msk [vmem:[#allocation5] sm:$0xff] %vm27, %v40
    %43 = vst.msk [vmem:[#allocation5 + $0x8] sm:$0xff] %vm27, %v41
    // Predicated region
    $region10: #{tpu_custom_call.1} parent=1 // pred_check
      _
    $region11: #{tpu_custom_call.1} parent=1 // pred_check_branch
      %45 = sbr.rel (0) target = $region13
    $region12: #{tpu_custom_call.1} parent=1 // pred_region
      %s47 = ssub.s32 256, 256
      %48 = vsyncadd [#allocation4], %s47
      %s49 = sshll.u32 [#allocation5], 4
      %s50 = int_to_ptr.vmem [resolvable:$true] %s49
      %55 = dma.vmem_to_hbm [thread:$0]  %s50, 256, %s1, [#allocation4], 128, 128, 8
    $region13: #{tpu_custom_call.1} parent=1 // pred_fallthru
      _
    // Predicated region
    $region14: #{tpu_custom_call.1} parent=1 // pred_check
      _
    $region15: #{tpu_custom_call.1} parent=1 // pred_check_branch
      %57 = sbr.rel (0) target = $region17
    $region16: #{tpu_custom_call.1} parent=1 // pred_region
      %58 = dma.done [#allocation4], 256
    $region17: #{tpu_custom_call.1} parent=1 // pred_fallthru
      _
    %59 = vsyncpa [#allocation3], 1
    %60 = vsyncpa [#allocation4], 1

</llo_original>
